<compile_context>
chip_gen: v7x
topology: tpu7x:2x2x1
jax: 0.10.0
libtpu: 0.0.40
codegen_flags: <defaults>
</compile_context>

<pallas_src>
import jax
import jax.numpy as jnp
import jax.scipy.special as jsp_special
import numpy as np
from jax.experimental import pallas as pl
from jax.experimental.pallas import tpu as pltpu


def _round_up(x, m):
    return (x + m - 1) // m * m


# ---- exact-GELU helper (erf via Abramowitz-Stegun 7.1.26) -------------------
_A1, _A2, _A3, _A4, _A5 = (0.254829592, -0.284496736, 1.421413741,
                           -1.453152027, 1.061405429)
_P = 0.3275911
_INV_SQRT2 = 0.7071067811865476


def _erf_poly(z):
    a = jnp.abs(z)
    t = 1.0 / (1.0 + _P * a)
    poly = t * (_A1 + t * (_A2 + t * (_A3 + t * (_A4 + t * _A5))))
    e = 1.0 - poly * jnp.exp(-(a * a))
    return jnp.where(z < 0.0, -e, e)


def _gelu_exact(h):
    return 0.5 * h * (1.0 + _erf_poly(h * _INV_SQRT2))


# ---- fused kernel body ------------------------------------------------------
def _emotion_kernel(x_ref, wg_ref, bg_ref, w1_ref, b1_ref, gamma_ref, beta_ref,
                    w2_ref, b2_ref, out_ref):
    x = x_ref[...]                                               # (T, H) f32

    # attention gate: sigmoid(<x, wg> + bg)  -> (T, 1)
    # (VPU multiply + lane (XLU) reduction; avoids a 1-lane MXU matmul)
    att = jax.nn.sigmoid(
        jnp.sum(x * wg_ref[...], axis=-1, keepdims=True) + bg_ref[...])
    xg = x * att                                                 # (T, H)

    # Linear(H -> 2H) + exact GELU
    h = jnp.dot(xg, w1_ref[...], preferred_element_type=jnp.float32)
    h = h + b1_ref[...]
    h = _gelu_exact(h)                                           # (T, 2H)

    # LayerNorm over the feature (lane) axis, eps = 1e-5
    mu = jnp.mean(h, axis=-1, keepdims=True)
    hc = h - mu
    var = jnp.mean(hc * hc, axis=-1, keepdims=True)
    hn = hc * jax.lax.rsqrt(var + 1e-5)
    hn = hn * gamma_ref[...] + beta_ref[...]

    # Linear(2H -> num_emotions); stored at the final (unpadded) column width
    out = jnp.dot(hn, w2_ref[...], preferred_element_type=jnp.float32)
    out_ref[...] = (out + b2_ref[...]).astype(out_ref.dtype)


def _pick_tile(n):
    # Row tile: multiple of 8 (sublane), big enough to amortize per-step
    # overhead, >=2 grid steps when there is enough work (v7x megacore), and
    # capped at 2048 rows so double-buffered I/O plus lane-padded f32
    # intermediates (~4.5 KB/row) fit v5e's 16 MiB default scoped-VMEM budget
    # (and v7x's 64 MiB physical VMEM) without raising vmem_limit_bytes.
    if n <= 1024:
        return n            # single step; block dim == full array dim is legal
    if n < 4096:
        return _round_up(pl.cdiv(n, 2), 8)
    return 2048


# ---- wrapper ----------------------------------------------------------------
@jax.jit
def emotion_forward(x, wg, bg, w1, b1, gamma, beta, w2, b2):
    """x: (..., H) float32.  Returns (..., num_emotions) float32."""
    H = x.shape[-1]
    E = w2.shape[1]
    lead = x.shape[:-1]
    x_flat = x.reshape(-1, H)          # free reshape (no extra HBM pass)
    n = x_flat.shape[0]

    tile_n = _pick_tile(n)
    grid = (pl.cdiv(n, tile_n),)       # ragged last tile: OOB reads = garbage
                                       # rows (row-independent), OOB writes masked

    def _const(shape):  # weight stays resident: same block every grid step
        return pl.BlockSpec(shape, lambda i: (0,) * len(shape))

    out = pl.pallas_call(
        _emotion_kernel,
        out_shape=jax.ShapeDtypeStruct((n, E), jnp.float32),
        grid=grid,
        in_specs=[
            pl.BlockSpec((tile_n, H), lambda i: (i, 0)),         # x row tile
            _const(wg.shape), _const(bg.shape),
            _const(w1.shape), _const(b1.shape),
            _const(gamma.shape), _const(beta.shape),
            _const(w2.shape), _const(b2.shape),
        ],
        out_specs=pl.BlockSpec((tile_n, E), lambda i: (i, 0)),
        compiler_params=pltpu.CompilerParams(
            dimension_semantics=("parallel",)),
    )(x_flat, wg, bg, w1, b1, gamma, beta, w2, b2)

    return out.reshape(*lead, E)       # free reshape; no pad/slice copies


# ---- pure-JAX reference mirroring the PyTorch forward -----------------------
def reference_forward(x, wg, bg, w1, b1, gamma, beta, w2, b2):
    att = jax.nn.sigmoid(jnp.sum(x * wg[0], axis=-1, keepdims=True) + bg[0, 0])
    xg = x * att
    h = jnp.einsum("...h,hf->...f", xg, w1) + b1[0]
    h = 0.5 * h * (1.0 + jsp_special.erf(h * _INV_SQRT2))       # exact GELU
    mu = jnp.mean(h, axis=-1, keepdims=True)
    var = jnp.mean((h - mu) ** 2, axis=-1, keepdims=True)
    hn = (h - mu) / jnp.sqrt(var + 1e-5)
    hn = hn * gamma[0] + beta[0]
    return jnp.einsum("...f,fe->...e", hn, w2) + b2[0]


if __name__ == "__main__":
    # Small, module-consistent shapes: batch=2, seq=8, hidden(input_size)=32.
    input_size = 32
    num_emotions = 6
    B, S = 2, 8

    key = jax.random.PRNGKey(0)
    ks = jax.random.split(key, 9)

    x = jax.random.normal(ks[0], (B, S, input_size), dtype=jnp.float32)

    # Parameters (stored transposed vs. PyTorch Linear where applicable).
    wg = 0.2 * jax.random.normal(ks[1], (1, input_size), jnp.float32)
    bg = 0.2 * jax.random.normal(ks[2], (1, 1), jnp.float32)
    w1 = 0.2 * jax.random.normal(ks[3], (input_size, 2 * input_size), jnp.float32)
    b1 = 0.2 * jax.random.normal(ks[4], (1, 2 * input_size), jnp.float32)
    gamma = 1.0 + 0.1 * jax.random.normal(ks[5], (1, 2 * input_size), jnp.float32)
    beta = 0.1 * jax.random.normal(ks[6], (1, 2 * input_size), jnp.float32)
    w2 = 0.2 * jax.random.normal(ks[7], (2 * input_size, num_emotions), jnp.float32)
    b2 = 0.2 * jax.random.normal(ks[8], (1, num_emotions), jnp.float32)

    out = emotion_forward(x, wg, bg, w1, b1, gamma, beta, w2, b2)
    out = jax.block_until_ready(out)

    ref = reference_forward(x, wg, bg, w1, b1, gamma, beta, w2, b2)
    np.testing.assert_allclose(np.asarray(out), np.asarray(ref),
                               rtol=1e-4, atol=1e-4)

    print("KERNEL_OK")
</pallas_src>

<mosaic_0001>
module attributes {stable_mosaic.version = 11 : i64} {
  func.func @_emotion_kernel(%arg0: i32, %arg1: memref<16x32xf32, #tpu.memory_space<vmem>>, %arg2: memref<1x32xf32, #tpu.memory_space<vmem>>, %arg3: memref<1x1xf32, #tpu.memory_space<vmem>>, %arg4: memref<32x64xf32, #tpu.memory_space<vmem>>, %arg5: memref<1x64xf32, #tpu.memory_space<vmem>>, %arg6: memref<1x64xf32, #tpu.memory_space<vmem>>, %arg7: memref<1x64xf32, #tpu.memory_space<vmem>>, %arg8: memref<64x6xf32, #tpu.memory_space<vmem>>, %arg9: memref<1x6xf32, #tpu.memory_space<vmem>>, %arg10: memref<16x6xf32, #tpu.memory_space<vmem>>) attributes {dimension_semantics = [#tpu.dimension_semantics<parallel>], iteration_bounds = array<i64: 1>, scalar_prefetch = 0 : i64, scratch_operands = 0 : i64, tpu.core_type = #tpu.core_type<tc>, window_params = [{transform_indices = @transform_0, window_bounds = array<i64: 16, 32>}, {pipeline_mode = #tpu.pipeline_mode<synchronous>, transform_indices = @transform_1, window_bounds = array<i64: 1, 32>}, {pipeline_mode = #tpu.pipeline_mode<synchronous>, transform_indices = @transform_2, window_bounds = array<i64: 1, 1>}, {pipeline_mode = #tpu.pipeline_mode<synchronous>, transform_indices = @transform_3, window_bounds = array<i64: 32, 64>}, {pipeline_mode = #tpu.pipeline_mode<synchronous>, transform_indices = @transform_4, window_bounds = array<i64: 1, 64>}, {pipeline_mode = #tpu.pipeline_mode<synchronous>, transform_indices = @transform_5, window_bounds = array<i64: 1, 64>}, {pipeline_mode = #tpu.pipeline_mode<synchronous>, transform_indices = @transform_6, window_bounds = array<i64: 1, 64>}, {pipeline_mode = #tpu.pipeline_mode<synchronous>, transform_indices = @transform_7, window_bounds = array<i64: 64, 6>}, {pipeline_mode = #tpu.pipeline_mode<synchronous>, transform_indices = @transform_8, window_bounds = array<i64: 1, 6>}, {transform_indices = @transform_9, window_bounds = array<i64: 16, 6>}]} {
    %c0 = arith.constant 0 : index
    %c0_0 = arith.constant 0 : index
    %0 = vector.load %arg1[%c0, %c0_0] : memref<16x32xf32, #tpu.memory_space<vmem>>, vector<16x32xf32>
    %c0_1 = arith.constant 0 : index
    %c0_2 = arith.constant 0 : index
    %1 = vector.load %arg2[%c0_1, %c0_2] : memref<1x32xf32, #tpu.memory_space<vmem>>, vector<1x32xf32>
    %2 = vector.broadcast %1 : vector<1x32xf32> to vector<16x32xf32>
    %3 = arith.mulf %0, %2 : vector<16x32xf32>
    %cst = arith.constant dense<0.000000e+00> : vector<16xf32>
    %4 = vector.multi_reduction <add>, %3, %cst [1] : vector<16x32xf32> to vector<16xf32>
    %5 = vector.shape_cast %4 : vector<16xf32> to vector<16x1xf32>
    %c0_3 = arith.constant 0 : index
    %c0_4 = arith.constant 0 : index
    %6 = vector.load %arg3[%c0_3, %c0_4] : memref<1x1xf32, #tpu.memory_space<vmem>>, vector<1x1xf32>
    %7 = vector.broadcast %6 : vector<1x1xf32> to vector<16x1xf32>
    %8 = arith.addf %5, %7 : vector<16x1xf32>
    %9 = arith.negf %8 : vector<16x1xf32>
    %10 = math.exp %9 : vector<16x1xf32>
    %cst_5 = arith.constant 1.000000e+00 : f32
    %11 = vector.broadcast %cst_5 : f32 to vector<16x1xf32>
    %12 = arith.addf %11, %10 : vector<16x1xf32>
    %13 = arith.divf %11, %12 : vector<16x1xf32>
    %14 = vector.broadcast %13 : vector<16x1xf32> to vector<16x32xf32>
    %15 = arith.mulf %0, %14 : vector<16x32xf32>
    %c0_6 = arith.constant 0 : index
    %c0_7 = arith.constant 0 : index
    %16 = vector.load %arg4[%c0_6, %c0_7] : memref<32x64xf32, #tpu.memory_space<vmem>>, vector<32x64xf32>
    %cst_8 = arith.constant dense<0.000000e+00> : vector<16x64xf32>
    %17 = tpu.matmul %15, %16, %cst_8 {dimension_numbers = #tpu.dot_dimension_numbers<[1], [0], [0], [1], [0, 0, 1, 1], [], []>} : vector<16x32xf32>, vector<32x64xf32>, vector<16x64xf32> -> vector<16x64xf32>
    %c0_9 = arith.constant 0 : index
    %c0_10 = arith.constant 0 : index
    %18 = vector.load %arg5[%c0_9, %c0_10] : memref<1x64xf32, #tpu.memory_space<vmem>>, vector<1x64xf32>
    %19 = vector.broadcast %18 : vector<1x64xf32> to vector<16x64xf32>
    %20 = arith.addf %17, %19 : vector<16x64xf32>
    %cst_11 = arith.constant 5.000000e-01 : f32
    %21 = vector.broadcast %cst_11 : f32 to vector<16x64xf32>
    %22 = arith.mulf %21, %20 : vector<16x64xf32>
    %cst_12 = arith.constant 0.707106769 : f32
    %23 = vector.broadcast %cst_12 : f32 to vector<16x64xf32>
    %24 = arith.mulf %20, %23 : vector<16x64xf32>
    %25 = math.absf %24 : vector<16x64xf32>
    %cst_13 = arith.constant 0.327591091 : f32
    %26 = vector.broadcast %cst_13 : f32 to vector<16x64xf32>
    %27 = arith.mulf %26, %25 : vector<16x64xf32>
    %cst_14 = arith.constant 1.000000e+00 : f32
    %28 = vector.broadcast %cst_14 : f32 to vector<16x64xf32>
    %29 = arith.addf %28, %27 : vector<16x64xf32>
    %cst_15 = arith.constant 1.000000e+00 : f32
    %30 = vector.broadcast %cst_15 : f32 to vector<16x64xf32>
    %31 = arith.divf %30, %29 : vector<16x64xf32>
    %cst_16 = arith.constant 1.06140542 : f32
    %32 = vector.broadcast %cst_16 : f32 to vector<16x64xf32>
    %33 = arith.mulf %31, %32 : vector<16x64xf32>
    %cst_17 = arith.constant -1.45315206 : f32
    %34 = vector.broadcast %cst_17 : f32 to vector<16x64xf32>
    %35 = arith.addf %34, %33 : vector<16x64xf32>
    %36 = arith.mulf %31, %35 : vector<16x64xf32>
    %cst_18 = arith.constant 1.42141378 : f32
    %37 = vector.broadcast %cst_18 : f32 to vector<16x64xf32>
    %38 = arith.addf %37, %36 : vector<16x64xf32>
    %39 = arith.mulf %31, %38 : vector<16x64xf32>
    %cst_19 = arith.constant -0.284496725 : f32
    %40 = vector.broadcast %cst_19 : f32 to vector<16x64xf32>
    %41 = arith.addf %40, %39 : vector<16x64xf32>
    %42 = arith.mulf %31, %41 : vector<16x64xf32>
    %cst_20 = arith.constant 0.254829586 : f32
    %43 = vector.broadcast %cst_20 : f32 to vector<16x64xf32>
    %44 = arith.addf %43, %42 : vector<16x64xf32>
    %45 = arith.mulf %31, %44 : vector<16x64xf32>
    %46 = arith.mulf %25, %25 : vector<16x64xf32>
    %cst_21 = arith.constant 0.000000e+00 : f32
    %47 = vector.broadcast %cst_21 : f32 to vector<16x64xf32>
    %48 = arith.subf %47, %46 : vector<16x64xf32>
    %49 = math.exp %48 : vector<16x64xf32>
    %50 = arith.mulf %45, %49 : vector<16x64xf32>
    %cst_22 = arith.constant 1.000000e+00 : f32
    %51 = vector.broadcast %cst_22 : f32 to vector<16x64xf32>
    %52 = arith.subf %51, %50 : vector<16x64xf32>
    %cst_23 = arith.constant 0.000000e+00 : f32
    %53 = vector.broadcast %cst_23 : f32 to vector<16x64xf32>
    %54 = arith.cmpf olt, %24, %53 : vector<16x64xf32>
    %cst_24 = arith.constant 0.000000e+00 : f32
    %55 = vector.broadcast %cst_24 : f32 to vector<16x64xf32>
    %56 = arith.subf %55, %52 : vector<16x64xf32>
    %57 = arith.select %54, %56, %52 : vector<16x64xi1>, vector<16x64xf32>
    %cst_25 = arith.constant 1.000000e+00 : f32
    %58 = vector.broadcast %cst_25 : f32 to vector<16x64xf32>
    %59 = arith.addf %58, %57 : vector<16x64xf32>
    %60 = arith.mulf %22, %59 : vector<16x64xf32>
    %cst_26 = arith.constant dense<0.000000e+00> : vector<16xf32>
    %61 = vector.multi_reduction <add>, %60, %cst_26 [1] : vector<16x64xf32> to vector<16xf32>
    %62 = vector.shape_cast %61 : vector<16xf32> to vector<16x1xf32>
    %cst_27 = arith.constant 6.400000e+01 : f32
    %63 = vector.broadcast %cst_27 : f32 to vector<16x1xf32>
    %64 = arith.divf %62, %63 : vector<16x1xf32>
    %65 = vector.broadcast %64 : vector<16x1xf32> to vector<16x64xf32>
    %66 = arith.subf %60, %65 : vector<16x64xf32>
    %67 = arith.mulf %66, %66 : vector<16x64xf32>
    %cst_28 = arith.constant dense<0.000000e+00> : vector<16xf32>
    %68 = vector.multi_reduction <add>, %67, %cst_28 [1] : vector<16x64xf32> to vector<16xf32>
    %69 = vector.shape_cast %68 : vector<16xf32> to vector<16x1xf32>
    %cst_29 = arith.constant 6.400000e+01 : f32
    %70 = vector.broadcast %cst_29 : f32 to vector<16x1xf32>
    %71 = arith.divf %69, %70 : vector<16x1xf32>
    %cst_30 = arith.constant 9.99999974E-6 : f32
    %72 = vector.broadcast %cst_30 : f32 to vector<16x1xf32>
    %73 = arith.addf %71, %72 : vector<16x1xf32>
    %74 = math.rsqrt %73 : vector<16x1xf32>
    %75 = vector.broadcast %74 : vector<16x1xf32> to vector<16x64xf32>
    %76 = arith.mulf %66, %75 : vector<16x64xf32>
    %c0_31 = arith.constant 0 : index
    %c0_32 = arith.constant 0 : index
    %77 = vector.load %arg6[%c0_31, %c0_32] : memref<1x64xf32, #tpu.memory_space<vmem>>, vector<1x64xf32>
    %78 = vector.broadcast %77 : vector<1x64xf32> to vector<16x64xf32>
    %79 = arith.mulf %76, %78 : vector<16x64xf32>
    %c0_33 = arith.constant 0 : index
    %c0_34 = arith.constant 0 : index
    %80 = vector.load %arg7[%c0_33, %c0_34] : memref<1x64xf32, #tpu.memory_space<vmem>>, vector<1x64xf32>
    %81 = vector.broadcast %80 : vector<1x64xf32> to vector<16x64xf32>
    %82 = arith.addf %79, %81 : vector<16x64xf32>
    %c0_35 = arith.constant 0 : index
    %c0_36 = arith.constant 0 : index
    %83 = vector.load %arg8[%c0_35, %c0_36] : memref<64x6xf32, #tpu.memory_space<vmem>>, vector<64x6xf32>
    %cst_37 = arith.constant dense<0.000000e+00> : vector<16x6xf32>
    %84 = tpu.matmul %82, %83, %cst_37 {dimension_numbers = #tpu.dot_dimension_numbers<[1], [0], [0], [1], [0, 0, 1, 1], [], []>} : vector<16x64xf32>, vector<64x6xf32>, vector<16x6xf32> -> vector<16x6xf32>
    %c0_38 = arith.constant 0 : index
    %c0_39 = arith.constant 0 : index
    %85 = vector.load %arg9[%c0_38, %c0_39] : memref<1x6xf32, #tpu.memory_space<vmem>>, vector<1x6xf32>
    %86 = vector.broadcast %85 : vector<1x6xf32> to vector<16x6xf32>
    %87 = arith.addf %84, %86 : vector<16x6xf32>
    %c0_40 = arith.constant 0 : index
    %c0_41 = arith.constant 0 : index
    %88 = vector.load %arg10[%c0_40, %c0_41] : memref<16x6xf32, #tpu.memory_space<vmem>>, vector<16x6xf32>
    tpu.vector_store %arg10[%c0_40, %c0_41], %87 {strides = array<i32>} : memref<16x6xf32, #tpu.memory_space<vmem>>, vector<16x6xf32>,
    return
  }
  func.func @transform_0(%arg0: i32) -> (i32, i32) {
    %c0_i32 = arith.constant 0 : i32
    %c0_i32_0 = arith.constant 0 : i32
    return %arg0, %c0_i32 : i32, i32
  }
  func.func @transform_1(%arg0: i32) -> (i32, i32) {
    %c0_i32 = arith.constant 0 : i32
    %c0_i32_0 = arith.constant 0 : i32
    %c0_i32_1 = arith.constant 0 : i32
    return %c0_i32, %c0_i32_0 : i32, i32
  }
  func.func @transform_2(%arg0: i32) -> (i32, i32) {
    %c0_i32 = arith.constant 0 : i32
    %c0_i32_0 = arith.constant 0 : i32
    %c0_i32_1 = arith.constant 0 : i32
    return %c0_i32, %c0_i32_0 : i32, i32
  }
  func.func @transform_3(%arg0: i32) -> (i32, i32) {
    %c0_i32 = arith.constant 0 : i32
    %c0_i32_0 = arith.constant 0 : i32
    %c0_i32_1 = arith.constant 0 : i32
    return %c0_i32, %c0_i32_0 : i32, i32
  }
  func.func @transform_4(%arg0: i32) -> (i32, i32) {
    %c0_i32 = arith.constant 0 : i32
    %c0_i32_0 = arith.constant 0 : i32
    %c0_i32_1 = arith.constant 0 : i32
    return %c0_i32, %c0_i32_0 : i32, i32
  }
  func.func @transform_5(%arg0: i32) -> (i32, i32) {
    %c0_i32 = arith.constant 0 : i32
    %c0_i32_0 = arith.constant 0 : i32
    %c0_i32_1 = arith.constant 0 : i32
    return %c0_i32, %c0_i32_0 : i32, i32
  }
  func.func @transform_6(%arg0: i32) -> (i32, i32) {
    %c0_i32 = arith.constant 0 : i32
    %c0_i32_0 = arith.constant 0 : i32
    %c0_i32_1 = arith.constant 0 : i32
    return %c0_i32, %c0_i32_0 : i32, i32
  }
  func.func @transform_7(%arg0: i32) -> (i32, i32) {
    %c0_i32 = arith.constant 0 : i32
    %c0_i32_0 = arith.constant 0 : i32
    %c0_i32_1 = arith.constant 0 : i32
    return %c0_i32, %c0_i32_0 : i32, i32
  }
  func.func @transform_8(%arg0: i32) -> (i32, i32) {
    %c0_i32 = arith.constant 0 : i32
    %c0_i32_0 = arith.constant 0 : i32
    %c0_i32_1 = arith.constant 0 : i32
    return %c0_i32, %c0_i32_0 : i32, i32
  }
  func.func @transform_9(%arg0: i32) -> (i32, i32) {
    %c0_i32 = arith.constant 0 : i32
    %c0_i32_0 = arith.constant 0 : i32
    return %arg0, %c0_i32 : i32, i32
  }
}

</mosaic_0001>

<llo_original>
// kernel: emotion_forward.1
$region0: #{emotion_forward.1}
  #allocation0 [shape = 'u32[]', space=smem, size = 0x4, offset = 0x4, fixed_abs, tag = 'smem constant byte address 0x4 - core index']
  #allocation1 [shape = 'u32[144,128]{1,0:T(1,128)}', space=vmem, size = 0x12000, scoped, tag = 'internal scratch']
  #allocation2 [shape = 'f32[1,1]{1,0:T(1,128)S(1)}', space=vmem, size = 0x200, scoped, tag = 'scoped memory for emotion_forward.1']
  %s0 = inlined_call_operand.vmem [shape: f32[16,32], index: 0, kind: input, shape index: {}]
  %s1 = inlined_call_operand.vmem [shape: f32[1,32], index: 1, kind: input, shape index: {}]
  %s2 = inlined_call_operand.<no memory space> [shape: f32[1,1], index: 2, kind: input, shape index: {}]
  %s3 = inlined_call_operand.vmem [shape: f32[32,64], index: 3, kind: input, shape index: {}]
  %s4 = inlined_call_operand.vmem [shape: f32[1,64], index: 4, kind: input, shape index: {}]
  %s5 = inlined_call_operand.vmem [shape: f32[1,64], index: 5, kind: input, shape index: {}]
  %s6 = inlined_call_operand.vmem [shape: f32[1,64], index: 6, kind: input, shape index: {}]
  %s7 = inlined_call_operand.vmem [shape: f32[64,6], index: 7, kind: input, shape index: {}]
  %s8 = inlined_call_operand.vmem [shape: f32[1,6], index: 8, kind: input, shape index: {}]
  %s9 = inlined_call_operand.vmem [shape: f32[16,6], index: 9, kind: output, shape index: {}]
  %s10 = sld [smem:[#allocation0]]
  $region46: #{emotion_forward.1} parent=0
    _
  %s12 = ssub.s32 1, %s10
  %s13 = scalar_select 0, %s12, %s10
  %v14 = vstv %s2
  %15 = vst [vmem:[#allocation2] sm:$0x1] %v14
  // Predicated region
  $region2: #{emotion_forward.1} parent=0 // pred_check
    _
  $region3: #{emotion_forward.1} parent=0 // pred_check_branch
    %17 = sbr.rel (0) target = $region5
  $region4: #{emotion_forward.1} parent=0 // pred_region
    _
  $region5: #{emotion_forward.1} parent=0 // pred_fallthru
    _
  // Predicated region
  $region6: #{emotion_forward.1} parent=0 // pred_check
    _
  $region7: #{emotion_forward.1} parent=0 // pred_check_branch
    %19 = sbr.rel (0) target = $region9
  $region8: #{emotion_forward.1} parent=0 // pred_region
    _
  $region9: #{emotion_forward.1} parent=0 // pred_fallthru
    _
  // Predicated region
  $region10: #{emotion_forward.1} parent=0 // pred_check
    _
  $region11: #{emotion_forward.1} parent=0 // pred_check_branch
    %21 = sbr.rel (0) target = $region13
  $region12: #{emotion_forward.1} parent=0 // pred_region
    _
  $region13: #{emotion_forward.1} parent=0 // pred_fallthru
    _
  // Predicated region
  $region14: #{emotion_forward.1} parent=0 // pred_check
    _
  $region15: #{emotion_forward.1} parent=0 // pred_check_branch
    %23 = sbr.rel (0) target = $region17
  $region16: #{emotion_forward.1} parent=0 // pred_region
    _
  $region17: #{emotion_forward.1} parent=0 // pred_fallthru
    _
  // Predicated region
  $region18: #{emotion_forward.1} parent=0 // pred_check
    _
  $region19: #{emotion_forward.1} parent=0 // pred_check_branch
    %25 = sbr.rel (0) target = $region21
  $region20: #{emotion_forward.1} parent=0 // pred_region
    _
  $region21: #{emotion_forward.1} parent=0 // pred_fallthru
    _
  // Predicated region
  $region22: #{emotion_forward.1} parent=0 // pred_check
    _
  $region23: #{emotion_forward.1} parent=0 // pred_check_branch
    %27 = sbr.rel (0) target = $region25
  $region24: #{emotion_forward.1} parent=0 // pred_region
    _
  $region25: #{emotion_forward.1} parent=0 // pred_fallthru
    _
  // Predicated region
  $region26: #{emotion_forward.1} parent=0 // pred_check
    _
  $region27: #{emotion_forward.1} parent=0 // pred_check_branch
    %29 = sbr.rel (0) target = $region29
  $region28: #{emotion_forward.1} parent=0 // pred_region
    _
  $region29: #{emotion_forward.1} parent=0 // pred_fallthru
    _
  // Predicated region
  $region30: #{emotion_forward.1} parent=0 // pred_check
    _
  $region31: #{emotion_forward.1} parent=0 // pred_check_branch
    %31 = sbr.rel (0) target = $region33
  $region32: #{emotion_forward.1} parent=0 // pred_region
    _
  $region33: #{emotion_forward.1} parent=0 // pred_fallthru
    _
  // Predicated region
  $region34: #{emotion_forward.1} parent=0 // pred_check
    _
  $region35: #{emotion_forward.1} parent=0 // pred_check_branch
    %33 = sbr.rel (0) target = $region37
  $region36: #{emotion_forward.1} parent=0 // pred_region
    _
  $region37: #{emotion_forward.1} parent=0 // pred_fallthru
    _
  %v34 = vld [vmem:[%s0] sm:$0xff]
  %v35 = vld [vmem:[%s0 + $0x8] sm:$0xff]
  %v36 = vld [vmem:[%s1] sm:$0x1]
  %v38 = vlaneseq
  %v39 = vshrl.u32 %v38, 7
  %v40 = vsub.s32 0, %v39
  %v41 = vrot.slane %v36, %v40
  %v43 = vmul.f32 %v34, %v41
  %v44 = vmul.f32 %v35, %v41
  %vm45 = vcmask 261120
  %v46 = vsel %vm45, %v43, 0.0
  %47 = vadd.xlane.f32.xlu0 %v46
  %v48 = vpop.xlane.xlu0 %47
  %v49 = vsel %vm45, %v44, 0.0
  %50 = vadd.xlane.f32.xlu0 %v49
  %v51 = vpop.xlane.xlu0 %50
  %v52 = vld [vmem:[#allocation2] sm:$0x1]
  %v54 = vlaneseq
  %v55 = vshrl.u32 %v54, 7
  %v56 = vsub.s32 0, %v55
  %v57 = vrot.slane %v52, %v56
  %v59 = vadd.f32 %v48, %v57
  %v60 = vadd.f32 %v51, %v57
  %v61 = vxor.u32 %v59, 2147483648
  %v62 = vxor.u32 %v60, 2147483648
  %v63 = vmul.f32 %v61, 1.442695
  %v64 = vpow.pop %v63
  %v65 = vmul.f32 %v62, 1.442695
  %v66 = vpow.pop %v65
  %v67 = vadd.f32 %v64, 1.0
  %v68 = vadd.f32 %v66, 1.0
  %v69 = vrcp.pop %v67
  %v70 = vmul.f32 1.0, %v69
  %v71 = vrcp.pop %v68
  %v72 = vmul.f32 1.0, %v71
  %74 = vset.pattern.permute.xlu0 0
  %75 = vperm.xlu0 %74, %v70
  %v76 = vpop.permute.xlu0 %75
  %79 = vset.pattern.permute.xlu0 0
  %80 = vperm.xlu0 %79, %v72
  %v81 = vpop.permute.xlu0 %80
  %v83 = vmul.f32 %v34, %v76
  %v84 = vmul.f32 %v35, %v81
  %v85 = vld [vmem:[%s3] sm:$0xff]
  %v86 = vld [vmem:[%s3 + $0x8] sm:$0xff]
  %v87 = vld [vmem:[%s3 + $0x10] sm:$0xff]
  %v88 = vld [vmem:[%s3 + $0x18] sm:$0xff]
  %v89 = vld [vmem:[%s4] sm:$0x1]
  %v91 = vlaneseq
  %v92 = vshrl.u32 %v91, 7
  %v93 = vsub.s32 0, %v92
  %v94 = vrot.slane %v89, %v93
  %v97 = vsel %vm45, %v83, 0
  %v100 = vsel %vm45, %v84, 0
  %102 = vmatprep.subr.mxu0 0.0
  %103 = vmatpush1.msra.mxu0 %v85
  %104 = vmatprep.subr.mxu0 0.0
  %105 = vmatpush1.msra.mxu0 %v86
  %106 = vmatprep.subr.mxu0 0.0
  %107 = vmatpush1.msra.mxu0 %v87
  %108 = vmatprep.subr.mxu0 0.0
  %109 = vmatpush1.msra.mxu0 %v88
  %110 = vmatprep.subr.mxu0 0.0
  %111 = vmatpush1.msra.mxu0 0.0
  %112 = vmatprep.subr.mxu0 0.0
  %113 = vmatpush1.msra.mxu0 0.0
  %114 = vmatprep.subr.mxu0 0.0
  %115 = vmatpush1.msra.mxu0 0.0
  %116 = vmatprep.subr.mxu0 0.0
  %117 = vmatpush1.msra.mxu0 0.0
  %118 = vmatprep.subr.mxu0 0.0
  %119 = vmatpush1.msra.mxu0 0.0
  %120 = vmatprep.subr.mxu0 0.0
  %121 = vmatpush1.msra.mxu0 0.0
  %122 = vmatprep.subr.mxu0 0.0
  %123 = vmatpush1.msra.mxu0 0.0
  %124 = vmatprep.subr.mxu0 0.0
  %125 = vmatpush1.msra.mxu0 0.0
  %126 = vmatprep.subr.mxu0 0.0
  %127 = vmatpush1.msra.mxu0 0.0
  %128 = vmatprep.subr.mxu0 0.0
  %129 = vmatpush1.msra.mxu0 0.0
  %130 = vmatprep.subr.mxu0 0.0
  %131 = vmatpush1.msra.mxu0 0.0
  %132 = vmatprep.subr.mxu0 0.0
  %133 = vmatpush1.msra.mxu0 0.0
  %134 = vmatprep.subr.mxu0 0.0
  %135 = vmatpush1.msra.mxu0 0.0
  %136 = vmatprep.subr.mxu0 0.0
  %137 = vmatpush1.msra.mxu0 0.0
  %138 = vmatprep.subr.mxu0 0.0
  %139 = vmatpush1.msra.mxu0 0.0
  %140 = vmatprep.subr.mxu0 0.0
  %141 = vmatpush1.msra.mxu0 0.0
  %142 = vmatprep.subr.mxu0 0.0
  %143 = vmatpush1.msra.mxu0 0.0
  %144 = vmatprep.subr.mxu0 0.0
  %145 = vmatpush1.msra.mxu0 0.0
  %146 = vmatprep.subr.mxu0 0.0
  %147 = vmatpush1.msra.mxu0 0.0
  %148 = vmatprep.subr.mxu0 0.0
  %149 = vmatpush1.msra.mxu0 0.0
  %150 = vmatprep.subr.mxu0 0.0
  %151 = vmatpush1.msra.mxu0 0.0
  %152 = vmatprep.subr.mxu0 0.0
  %153 = vmatpush1.msra.mxu0 0.0
  %154 = vmatprep.subr.mxu0 0.0
  %155 = vmatpush1.msra.mxu0 0.0
  %156 = vmatprep.subr.mxu0 0.0
  %157 = vmatpush1.msra.mxu0 0.0
  %158 = vmatprep.subr.mxu0 0.0
  %159 = vmatpush1.msra.mxu0 0.0
  %160 = vmatprep.subr.mxu0 0.0
  %161 = vmatpush1.msra.mxu0 0.0
  %162 = vmatprep.subr.mxu0 0.0
  %163 = vmatpush1.msra.mxu0 0.0
  %164 = vmatprep.subr.mxu0 0.0
  %165 = vmatpush1.msra.mxu0 0.0
  %166 = vmatprep.mubr.f32.mxu0 0.0
  %167 = vmatmul.mubr.f32.gmra.mrb[0].mxu0 %v97
  %v168 = vpop.f32.mrb[0].mxu0
  %v169 = vadd.f32 %v94, %v168
  %v170 = vpop.f32.mrb[0].mxu0
  %171 = vmatprep.mubr.f32.mxu0 0.0
  %172 = vmatmul.mubr.f32.gmra.mrb[0].mxu0 %v100
  %v173 = vpop.f32.mrb[0].mxu0
  %v174 = vadd.f32 %v94, %v173
  %v175 = vpop.f32.mrb[0].mxu0
  %176 = vdwg.mxu0
  %v177 = vmul.f32 %v169, 0.5
  %v178 = vmul.f32 %v174, 0.5
  %v179 = vmul.f32 %v169, 0.70710677
  %v180 = vmul.f32 %v174, 0.70710677
  %v181 = vand.u32 2147483647, %v179
  %v182 = vand.u32 2147483647, %v180
  %v183 = vmul.f32 %v181, 0.3275911
  %v184 = vmul.f32 %v182, 0.3275911
  %v185 = vadd.f32 %v183, 1.0
  %v186 = vadd.f32 %v184, 1.0
  %v187 = vrcp.pop %v185
  %v188 = vmul.f32 1.0, %v187
  %v189 = vrcp.pop %v186
  %v190 = vmul.f32 1.0, %v189
  %v191 = vmul.f32 %v188, 1.0614054
  %v192 = vmul.f32 %v190, 1.0614054
  %v193 = vadd.f32 %v191, -1.4531521
  %v194 = vadd.f32 %v192, -1.4531521
  %v195 = vmul.f32 %v188, %v193
  %v196 = vmul.f32 %v190, %v194
  %v197 = vadd.f32 %v195, 1.4214138
  %v198 = vadd.f32 %v196, 1.4214138
  %v199 = vmul.f32 %v188, %v197
  %v200 = vmul.f32 %v190, %v198
  %v201 = vadd.f32 %v199, -0.28449672
  %v202 = vadd.f32 %v200, -0.28449672
  %v203 = vmul.f32 %v188, %v201
  %v204 = vmul.f32 %v190, %v202
  %v205 = vadd.f32 %v203, 0.2548296
  %v206 = vadd.f32 %v204, 0.2548296
  %v207 = vmul.f32 %v188, %v205
  %v208 = vmul.f32 %v190, %v206
  %v209 = vmul.f32 %v181, %v181
  %v210 = vmul.f32 %v182, %v182
  %v211 = vsub.f32 0.0, %v209
  %v212 = vsub.f32 0.0, %v210
  %v213 = vmul.f32 %v211, 1.442695
  %v214 = vpow.pop %v213
  %v215 = vmul.f32 %v212, 1.442695
  %v216 = vpow.pop %v215
  %v217 = vmul.f32 %v207, %v214
  %v218 = vmul.f32 %v208, %v216
  %v219 = vsub.f32 1.0, %v217
  %v220 = vsub.f32 1.0, %v218
  %vm221 = vcmp.lt.f32.partialorder %v179, 0.0
  %vm222 = vcmp.lt.f32.partialorder %v180, 0.0
  %v223 = vsub.f32 0.0, %v219
  %v224 = vsub.f32 0.0, %v220
  %v225 = vsel %vm221, %v223, %v219
  %v226 = vsel %vm222, %v224, %v220
  %v227 = vadd.f32 %v225, 1.0
  %v228 = vadd.f32 %v226, 1.0
  %v229 = vmul.f32 %v177, %v227
  %v230 = vmul.f32 %v178, %v228
  %vm231 = vcmask 523264
  %v232 = vsel %vm231, %v229, 0.0
  %233 = vadd.xlane.f32.xlu0 %v232
  %v234 = vpop.xlane.xlu0 %233
  %v235 = vsel %vm231, %v230, 0.0
  %236 = vadd.xlane.f32.xlu0 %v235
  %v237 = vpop.xlane.xlu0 %236
  %v238 = vrcp.pop 64.0
  %v239 = vmul.f32 %v234, %v238
  %v240 = vmul.f32 %v237, %v238
  %v241 = vsub.f32 %v229, %v239
  %v242 = vsub.f32 %v230, %v240
  %v243 = vmul.f32 %v241, %v241
  %v244 = vmul.f32 %v242, %v242
  %v245 = vsel %vm231, %v243, 0.0
  %246 = vadd.xlane.f32.xlu0 %v245
  %v247 = vpop.xlane.xlu0 %246
  %v248 = vsel %vm231, %v244, 0.0
  %249 = vadd.xlane.f32.xlu0 %v248
  %v250 = vpop.xlane.xlu0 %249
  %v251 = vmul.f32 %v247, %v238
  %v252 = vmul.f32 %v250, %v238
  %v253 = vadd.f32 %v251, 1e-05
  %v254 = vadd.f32 %v252, 1e-05
  %v255 = vrsqrt.pop %v253
  %v256 = vrsqrt.pop %v254
  %v257 = vmul.f32 %v241, %v255
  %v258 = vmul.f32 %v242, %v256
  %v259 = vld [vmem:[%s5] sm:$0x1]
  %v261 = vlaneseq
  %v262 = vshrl.u32 %v261, 7
  %v263 = vsub.s32 0, %v262
  %v264 = vrot.slane %v259, %v263
  %v266 = vmul.f32 %v257, %v264
  %v267 = vmul.f32 %v258, %v264
  %v268 = vld [vmem:[%s6] sm:$0x1]
  %v270 = vlaneseq
  %v271 = vshrl.u32 %v270, 7
  %v272 = vsub.s32 0, %v271
  %v273 = vrot.slane %v268, %v272
  %v275 = vadd.f32 %v266, %v273
  %v276 = vadd.f32 %v267, %v273
  %v277 = vld [vmem:[%s7] sm:$0xff]
  %v278 = vld [vmem:[%s7 + $0x8] sm:$0xff]
  %v279 = vld [vmem:[%s7 + $0x10] sm:$0xff]
  %v280 = vld [vmem:[%s7 + $0x18] sm:$0xff]
  %v281 = vld [vmem:[%s7 + $0x20] sm:$0xff]
  %v282 = vld [vmem:[%s7 + $0x28] sm:$0xff]
  %v283 = vld [vmem:[%s7 + $0x30] sm:$0xff]
  %v284 = vld [vmem:[%s7 + $0x38] sm:$0xff]
  %v285 = vld [vmem:[%s8] sm:$0x1]
  %v287 = vlaneseq
  %v288 = vshrl.u32 %v287, 7
  %v289 = vsub.s32 0, %v288
  %v290 = vrot.slane %v285, %v289
  %v293 = vsel %vm231, %v275, 0
  %v296 = vsel %vm231, %v276, 0
  %298 = vmatprep.subr.mxu0 0.0
  %299 = vmatpush1.msra.mxu0 %v277
  %300 = vmatprep.subr.mxu0 0.0
  %301 = vmatpush1.msra.mxu0 %v278
  %302 = vmatprep.subr.mxu0 0.0
  %303 = vmatpush1.msra.mxu0 %v279
  %304 = vmatprep.subr.mxu0 0.0
  %305 = vmatpush1.msra.mxu0 %v280
  %306 = vmatprep.subr.mxu0 0.0
  %307 = vmatpush1.msra.mxu0 %v281
  %308 = vmatprep.subr.mxu0 0.0
  %309 = vmatpush1.msra.mxu0 %v282
  %310 = vmatprep.subr.mxu0 0.0
  %311 = vmatpush1.msra.mxu0 %v283
  %312 = vmatprep.subr.mxu0 0.0
  %313 = vmatpush1.msra.mxu0 %v284
  %314 = vmatprep.subr.mxu0 0.0
  %315 = vmatpush1.msra.mxu0 0.0
  %316 = vmatprep.subr.mxu0 0.0
  %317 = vmatpush1.msra.mxu0 0.0
  %318 = vmatprep.subr.mxu0 0.0
  %319 = vmatpush1.msra.mxu0 0.0
  %320 = vmatprep.subr.mxu0 0.0
  %321 = vmatpush1.msra.mxu0 0.0
  %322 = vmatprep.subr.mxu0 0.0
  %323 = vmatpush1.msra.mxu0 0.0
  %324 = vmatprep.subr.mxu0 0.0
  %325 = vmatpush1.msra.mxu0 0.0
  %326 = vmatprep.subr.mxu0 0.0
  %327 = vmatpush1.msra.mxu0 0.0
  %328 = vmatprep.subr.mxu0 0.0
  %329 = vmatpush1.msra.mxu0 0.0
  %330 = vmatprep.subr.mxu0 0.0
  %331 = vmatpush1.msra.mxu0 0.0
  %332 = vmatprep.subr.mxu0 0.0
  %333 = vmatpush1.msra.mxu0 0.0
  %334 = vmatprep.subr.mxu0 0.0
  %335 = vmatpush1.msra.mxu0 0.0
  %336 = vmatprep.subr.mxu0 0.0
  %337 = vmatpush1.msra.mxu0 0.0
  %338 = vmatprep.subr.mxu0 0.0
  %339 = vmatpush1.msra.mxu0 0.0
  %340 = vmatprep.subr.mxu0 0.0
  %341 = vmatpush1.msra.mxu0 0.0
  %342 = vmatprep.subr.mxu0 0.0
  %343 = vmatpush1.msra.mxu0 0.0
  %344 = vmatprep.subr.mxu0 0.0
  %345 = vmatpush1.msra.mxu0 0.0
  %346 = vmatprep.subr.mxu0 0.0
  %347 = vmatpush1.msra.mxu0 0.0
  %348 = vmatprep.subr.mxu0 0.0
  %349 = vmatpush1.msra.mxu0 0.0
  %350 = vmatprep.subr.mxu0 0.0
  %351 = vmatpush1.msra.mxu0 0.0
  %352 = vmatprep.subr.mxu0 0.0
  %353 = vmatpush1.msra.mxu0 0.0
  %354 = vmatprep.subr.mxu0 0.0
  %355 = vmatpush1.msra.mxu0 0.0
  %356 = vmatprep.subr.mxu0 0.0
  %357 = vmatpush1.msra.mxu0 0.0
  %358 = vmatprep.subr.mxu0 0.0
  %359 = vmatpush1.msra.mxu0 0.0
  %360 = vmatprep.subr.mxu0 0.0
  %361 = vmatpush1.msra.mxu0 0.0
  %362 = vmatprep.mubr.f32.mxu0 0.0
  %363 = vmatmul.mubr.f32.gmra.mrb[0].mxu0 %v293
  %v364 = vpop.f32.mrb[0].mxu0
  %v365 = vadd.f32 %v290, %v364
  %v366 = vpop.f32.mrb[0].mxu0
  %367 = vmatprep.mubr.f32.mxu0 0.0
  %368 = vmatmul.mubr.f32.gmra.mrb[0].mxu0 %v296
  %v369 = vpop.f32.mrb[0].mxu0
  %v370 = vadd.f32 %v290, %v369
  %v371 = vpop.f32.mrb[0].mxu0
  %372 = vdwg.mxu0
  %vm373 = vcmask 48128
  %374 = vst.msk [vmem:[%s9] sm:$0xff] %vm373, %v365
  %375 = vst.msk [vmem:[%s9 + $0x8] sm:$0xff] %vm373, %v370
  // Predicated region
  $region38: #{emotion_forward.1} parent=0 // pred_check
    _
  $region39: #{emotion_forward.1} parent=0 // pred_check_branch
    %377 = sbr.rel (0) target = $region41
  $region40: #{emotion_forward.1} parent=0 // pred_region
    _
  $region41: #{emotion_forward.1} parent=0 // pred_fallthru
    _
  // Predicated region
  $region42: #{emotion_forward.1} parent=0 // pred_check
    _
  $region43: #{emotion_forward.1} parent=0 // pred_check_branch
    %379 = sbr.rel (0) target = $region45
  $region44: #{emotion_forward.1} parent=0 // pred_region
    _
  $region45: #{emotion_forward.1} parent=0 // pred_fallthru
    _

</llo_original>
